<compile_context>
chip_gen: v6e
topology: v6e:2x2x1
jax: 0.10.0
libtpu: 0.0.40
codegen_flags: <defaults>
</compile_context>

<pallas_src>
import math
from functools import partial

import jax
import jax.numpy as jnp
from jax.experimental import pallas as pl
from jax.experimental.pallas import tpu as pltpu


def _round_up(x, m):
    return ((x + m - 1) // m) * m


# ----------------------------------------------------------------------------
# Fused two-layer projection: out = (x @ W1^T + b1) @ W2^T + b2
# Grid: (row tiles, vocab tiles). h is computed once per row tile (j == 0) into
# a VMEM scratch and reused for every vocab tile.
# ----------------------------------------------------------------------------
def generator_kernel(x_ref, w1_ref, b1_ref, w2_ref, b2_ref, o_ref, h_ref):
    j = pl.program_id(1)

    @pl.when(j == 0)
    def _():
        h_ref[...] = (
            jnp.dot(x_ref[...].astype(jnp.bfloat16), w1_ref[...],
                    preferred_element_type=jnp.float32)
            + b1_ref[...])                       # (tm, hidden_p) f32, stays on-chip

    o_ref[...] = (
        jnp.dot(h_ref[...].astype(jnp.bfloat16), w2_ref[...],
                preferred_element_type=jnp.float32)
        + b2_ref[...]).astype(o_ref.dtype)


def generator_forward(params, x, *, vocab_num, tm=256, tn=512):
    """x: (..., d_model) -> (..., vocab_num). Matches Generator.forward."""
    w1_t, b1 = params["w1_t"], params["b1"]      # (d_model, hidden_p) bf16, (1, hidden_p) f32
    w2_t, b2 = params["w2_t"], params["b2"]      # (hidden_p, vocab_p) bf16, (1, vocab_p) f32
    d_model = x.shape[-1]                        # static (from the traced shape)
    hidden_p = w1_t.shape[1]
    vocab_p = w2_t.shape[1]

    lead = x.shape[:-1]
    n = 1
    for d in lead:
        n *= d
    x2d = x.reshape(n, d_model)

    # Row tile: sublane-aligned, padded so tm divides n_pad.
    tm = max(8, min(tm, _round_up(n, 8)))
    n_pad = _round_up(n, tm)
    if n_pad != n:
        x2d = jnp.pad(x2d, ((0, n_pad - n), (0, 0)))

    # Vocab tile: largest multiple of 128 <= tn that divides vocab_p.
    tn = min(tn, vocab_p)
    while vocab_p % tn != 0:
        tn -= 128

    grid = (n_pad // tm, vocab_p // tn)

    # VMEM budget: double-buffered inputs/outputs + h scratch, 2x headroom,
    # capped below v7x's 64 MiB physical VMEM.
    need = (2 * tm * d_model * 4            # x tiles (f32)
            + 2 * d_model * hidden_p * 2    # W1^T (bf16)
            + 2 * hidden_p * 4              # b1
            + 2 * hidden_p * tn * 2         # W2^T tiles (bf16)
            + 2 * tn * 4                    # b2 tiles
            + 2 * tm * tn * 4               # out tiles (f32)
            + tm * hidden_p * 4)            # h scratch (f32)
    vmem_limit = int(min(56 << 20, max(32 << 20, 2 * need)))

    cost = pl.CostEstimate(
        flops=2 * n_pad * hidden_p * (d_model + vocab_p),
        transcendentals=0,
        bytes_accessed=(x2d.size * 4 + w1_t.size * 2 + b1.size * 4
                        + (n_pad // tm) * (w2_t.size * 2 + b2.size * 4)
                        + n_pad * vocab_p * 4))

    out = pl.pallas_call(
        generator_kernel,
        out_shape=jax.ShapeDtypeStruct((n_pad, vocab_p), jnp.float32),
        grid_spec=pltpu.PrefetchScalarGridSpec(
            num_scalar_prefetch=0,
            grid=grid,
            in_specs=[
                pl.BlockSpec((tm, d_model), lambda i, j: (i, 0)),       # x row tile
                pl.BlockSpec((d_model, hidden_p), lambda i, j: (0, 0)),  # W1^T (whole)
                pl.BlockSpec((1, hidden_p), lambda i, j: (0, 0)),        # b1
                pl.BlockSpec((hidden_p, tn), lambda i, j: (0, j)),       # W2^T vocab tile
                pl.BlockSpec((1, tn), lambda i, j: (0, j)),              # b2 vocab tile
            ],
            out_specs=pl.BlockSpec((tm, tn), lambda i, j: (i, j)),
            scratch_shapes=[pltpu.VMEM((tm, hidden_p), jnp.float32)],    # h cache
        ),
        compiler_params=pltpu.CompilerParams(
            dimension_semantics=("parallel", "arbitrary"),
            vmem_limit_bytes=vmem_limit),
        cost_estimate=cost,
    )(x2d, w1_t, b1, w2_t, b2)

    return out[:n, :vocab_num].reshape(*lead, vocab_num)


# ----------------------------------------------------------------------------
# Parameter init mirroring PyTorch nn.Linear: U(-1/sqrt(fan_in), 1/sqrt(fan_in)).
# Weights pre-transposed, zero-padded to 128-lane multiples, stored in bf16.
# Returns (kernel params, f32 reference params).
# ----------------------------------------------------------------------------
def init_params(key, d_model, vocab_num):
    hidden = 4 * d_model
    hidden_p = _round_up(hidden, 128)
    vocab_p = _round_up(vocab_num, 128)

    k1, k2, k3, k4 = jax.random.split(key, 4)
    bound1 = 1.0 / math.sqrt(d_model)
    w1 = jax.random.uniform(k1, (hidden, d_model), jnp.float32, -bound1, bound1)
    b1 = jax.random.uniform(k2, (hidden,), jnp.float32, -bound1, bound1)
    bound2 = 1.0 / math.sqrt(hidden)
    w2 = jax.random.uniform(k3, (vocab_num, hidden), jnp.float32, -bound2, bound2)
    b2 = jax.random.uniform(k4, (vocab_num,), jnp.float32, -bound2, bound2)

    w1_t = jnp.zeros((d_model, hidden_p), jnp.bfloat16).at[:, :hidden].set(
        w1.T.astype(jnp.bfloat16))
    b1_p = jnp.zeros((1, hidden_p), jnp.float32).at[:, :hidden].set(b1[None, :])
    w2_t = jnp.zeros((hidden_p, vocab_p), jnp.bfloat16).at[:hidden, :vocab_num].set(
        w2.T.astype(jnp.bfloat16))
    b2_p = jnp.zeros((1, vocab_p), jnp.float32).at[:, :vocab_num].set(b2[None, :])

    params = {"w1_t": w1_t, "b1": b1_p, "w2_t": w2_t, "b2": b2_p}
    ref = {"w1": w1, "b1": b1, "w2": w2, "b2": b2}
    return params, ref


def _reference(ref, x):
    h = x @ ref["w1"].T + ref["b1"]
    return h @ ref["w2"].T + ref["b2"]


if __name__ == "__main__":
    B, T = 2, 8
    d_model, vocab_num = 32, 64

    key = jax.random.PRNGKey(0)
    kp, kx = jax.random.split(key)
    params, ref_params = init_params(kp, d_model, vocab_num)
    x = jax.random.normal(kx, (B, T, d_model), jnp.float32)

    # vocab_num is baked in via partial so it stays a static Python int under jit.
    fwd = jax.jit(partial(generator_forward, vocab_num=vocab_num))
    out = fwd(params, x)
    jax.block_until_ready(out)

    assert out.shape == (B, T, vocab_num)
    assert bool(jnp.all(jnp.isfinite(out)))

    # bf16 weights + f32 accumulation -> relaxed tolerance vs. the f32 reference.
    ref = _reference(ref_params, x)
    err = float(jnp.max(jnp.abs(out - ref)))
    assert bool(jnp.allclose(out, ref, atol=3e-2, rtol=3e-2)), err

    print("KERNEL_OK")
</pallas_src>

<mosaic_0001>
module attributes {stable_mosaic.version = 11 : i64} {
  func.func @generator_kernel(%arg0: i32, %arg1: i32, %arg2: memref<16x32xf32, #tpu.memory_space<vmem>>, %arg3: memref<32x128xbf16, #tpu.memory_space<vmem>>, %arg4: memref<1x128xf32, #tpu.memory_space<vmem>>, %arg5: memref<128x128xbf16, #tpu.memory_space<vmem>>, %arg6: memref<1x128xf32, #tpu.memory_space<vmem>>, %arg7: memref<16x128xf32, #tpu.memory_space<vmem>>, %arg8: memref<16x128xf32, #tpu.memory_space<vmem>>) attributes {dimension_semantics = [#tpu.dimension_semantics<parallel>, #tpu.dimension_semantics<arbitrary>], iteration_bounds = array<i64: 1, 1>, scalar_prefetch = 0 : i64, scratch_operands = 1 : i64, tpu.core_type = #tpu.core_type<tc>, window_params = [{transform_indices = @transform_0, window_bounds = array<i64: 16, 32>}, {pipeline_mode = #tpu.pipeline_mode<synchronous>, transform_indices = @transform_1, window_bounds = array<i64: 32, 128>}, {pipeline_mode = #tpu.pipeline_mode<synchronous>, transform_indices = @transform_2, window_bounds = array<i64: 1, 128>}, {transform_indices = @transform_3, window_bounds = array<i64: 128, 128>}, {transform_indices = @transform_4, window_bounds = array<i64: 1, 128>}, {transform_indices = @transform_5, window_bounds = array<i64: 16, 128>}]} {
    %c0_i32 = arith.constant 0 : i32
    %0 = arith.cmpi eq, %arg1, %c0_i32 : i32
    %1 = arith.extui %0 : i1 to i32
    %c0_i32_0 = arith.constant 0 : i32
    %2 = arith.cmpi ne, %1, %c0_i32_0 : i32
    scf.if %2 {
      %c0_8 = arith.constant 0 : index
      %c0_9 = arith.constant 0 : index
      %11 = vector.load %arg2[%c0_8, %c0_9] : memref<16x32xf32, #tpu.memory_space<vmem>>, vector<16x32xf32>
      %12 = arith.truncf %11 : vector<16x32xf32> to vector<16x32xbf16>
      %c0_10 = arith.constant 0 : index
      %c0_11 = arith.constant 0 : index
      %13 = vector.load %arg3[%c0_10, %c0_11] : memref<32x128xbf16, #tpu.memory_space<vmem>>, vector<32x128xbf16>
      %cst_12 = arith.constant dense<0.000000e+00> : vector<16x128xf32>
      %14 = tpu.matmul %12, %13, %cst_12 {dimension_numbers = #tpu.dot_dimension_numbers<[1], [0], [0], [1], [0, 0, 1, 1], [], []>} : vector<16x32xbf16>, vector<32x128xbf16>, vector<16x128xf32> -> vector<16x128xf32>
      %c0_13 = arith.constant 0 : index
      %c0_14 = arith.constant 0 : index
      %15 = vector.load %arg4[%c0_13, %c0_14] : memref<1x128xf32, #tpu.memory_space<vmem>>, vector<1x128xf32>
      %16 = vector.broadcast %15 : vector<1x128xf32> to vector<16x128xf32>
      %17 = arith.addf %14, %16 : vector<16x128xf32>
      %c0_15 = arith.constant 0 : index
      %c0_16 = arith.constant 0 : index
      %18 = vector.load %arg8[%c0_15, %c0_16] : memref<16x128xf32, #tpu.memory_space<vmem>>, vector<16x128xf32>
      tpu.vector_store %arg8[%c0_15, %c0_16], %17 {strides = array<i32>} : memref<16x128xf32, #tpu.memory_space<vmem>>, vector<16x128xf32>,
    } else {
    }
    %c0 = arith.constant 0 : index
    %c0_1 = arith.constant 0 : index
    %3 = vector.load %arg8[%c0, %c0_1] : memref<16x128xf32, #tpu.memory_space<vmem>>, vector<16x128xf32>
    %4 = arith.truncf %3 : vector<16x128xf32> to vector<16x128xbf16>
    %c0_2 = arith.constant 0 : index
    %c0_3 = arith.constant 0 : index
    %5 = vector.load %arg5[%c0_2, %c0_3] : memref<128x128xbf16, #tpu.memory_space<vmem>>, vector<128x128xbf16>
    %cst = arith.constant dense<0.000000e+00> : vector<16x128xf32>
    %6 = tpu.matmul %4, %5, %cst {dimension_numbers = #tpu.dot_dimension_numbers<[1], [0], [0], [1], [0, 0, 1, 1], [], []>} : vector<16x128xbf16>, vector<128x128xbf16>, vector<16x128xf32> -> vector<16x128xf32>
    %c0_4 = arith.constant 0 : index
    %c0_5 = arith.constant 0 : index
    %7 = vector.load %arg6[%c0_4, %c0_5] : memref<1x128xf32, #tpu.memory_space<vmem>>, vector<1x128xf32>
    %8 = vector.broadcast %7 : vector<1x128xf32> to vector<16x128xf32>
    %9 = arith.addf %6, %8 : vector<16x128xf32>
    %c0_6 = arith.constant 0 : index
    %c0_7 = arith.constant 0 : index
    %10 = vector.load %arg7[%c0_6, %c0_7] : memref<16x128xf32, #tpu.memory_space<vmem>>, vector<16x128xf32>
    tpu.vector_store %arg7[%c0_6, %c0_7], %9 {strides = array<i32>} : memref<16x128xf32, #tpu.memory_space<vmem>>, vector<16x128xf32>,
    return
  }
  func.func @transform_0(%arg0: i32, %arg1: i32) -> (i32, i32) {
    %c0_i32 = arith.constant 0 : i32
    %c0_i32_0 = arith.constant 0 : i32
    return %arg0, %c0_i32 : i32, i32
  }
  func.func @transform_1(%arg0: i32, %arg1: i32) -> (i32, i32) {
    %c0_i32 = arith.constant 0 : i32
    %c0_i32_0 = arith.constant 0 : i32
    %c0_i32_1 = arith.constant 0 : i32
    return %c0_i32, %c0_i32_0 : i32, i32
  }
  func.func @transform_2(%arg0: i32, %arg1: i32) -> (i32, i32) {
    %c0_i32 = arith.constant 0 : i32
    %c0_i32_0 = arith.constant 0 : i32
    %c0_i32_1 = arith.constant 0 : i32
    return %c0_i32, %c0_i32_0 : i32, i32
  }
  func.func @transform_3(%arg0: i32, %arg1: i32) -> (i32, i32) {
    %c0_i32 = arith.constant 0 : i32
    %c0_i32_0 = arith.constant 0 : i32
    return %c0_i32, %arg1 : i32, i32
  }
  func.func @transform_4(%arg0: i32, %arg1: i32) -> (i32, i32) {
    %c0_i32 = arith.constant 0 : i32
    %c0_i32_0 = arith.constant 0 : i32
    return %c0_i32, %arg1 : i32, i32
  }
  func.func @transform_5(%arg0: i32, %arg1: i32) -> (i32, i32) {
    %c0_i32 = arith.constant 0 : i32
    return %arg0, %arg1 : i32, i32
  }
}

</mosaic_0001>

<llo_original>
// kernel: generator_forward.1
$region0: #{generator_forward.1}
  #allocation0 [shape = 'u32[]', space=smem, size = 0x4, offset = 0x4, fixed_abs, tag = 'smem constant byte address 0x4 - core index']
  #allocation1 [shape = 'u32[144,128]{1,0:T(1,128)}', space=vmem, size = 0x12000, scoped, tag = 'internal scratch']
  #allocation2 [shape = 'f32[16,128]{1,0:T(8,128)}', space=vmem, size = 0x2000, scoped, tag = 'scratch operand']
  %s0 = inlined_call_operand.hbm [shape: f32[16,32], index: 0, kind: input, shape index: {}]
  %s1 = inlined_call_operand.hbm [shape: bf16[32,128], index: 1, kind: input, shape index: {}]
  %s2 = inlined_call_operand.vmem [shape: f32[1,128], index: 2, kind: input, shape index: {}]
  %s3 = inlined_call_operand.hbm [shape: bf16[128,128], index: 3, kind: input, shape index: {}]
  %s4 = inlined_call_operand.vmem [shape: f32[1,128], index: 4, kind: input, shape index: {}]
  %s5 = inlined_call_operand.vmem [shape: f32[16,128], index: 5, kind: output, shape index: {}]
  %s6 = sld [smem:[#allocation0]]
  $region46: #{generator_forward.1} parent=0
    _
  %s8 = ssub.s32 1, %s6
  %s9 = scalar_select 0, %s8, %s6
  $region1: #{generator_forward.1} parent=0
    #allocation3 [shape = 'u8[8192]{0}', space=vmem, size = 0x2000, scoped, tag = 'input window, operand 0, single buffered']
    #allocation4 [shape = 's32[1]{0}', space=sflag, size = 0x4, scoped, tag = 'scoped memory for generator_forward.1']
    #allocation5 [shape = 'u8[8192]{0}', space=vmem, size = 0x2000, scoped, tag = 'input window, operand 1, single buffered']
    #allocation6 [shape = 's32[1]{0}', space=sflag, size = 0x4, scoped, tag = 'scoped memory for generator_forward.1']
    #allocation7 [shape = 'u8[32768]{0}', space=vmem, size = 0x8000, scoped, tag = 'input window, operand 3, single buffered']
    %10 = vsyncpa [#allocation4], 0
    %11 = vsyncpa [#allocation6], 0
    // Predicated region
    $region2: #{generator_forward.1} parent=1 // pred_check
      _
    $region3: #{generator_forward.1} parent=1 // pred_check_branch
      %13 = sbr.rel (0) target = $region5
    $region4: #{generator_forward.1} parent=1 // pred_region
      %s15 = ssub.s32 256, 256
      %16 = vsyncadd [#allocation4], %s15
      %s17 = sshll.u32 [#allocation3], 4
      %s18 = int_to_ptr.vmem [resolvable:$true] %s17
      %23 = dma.hbm_to_vmem [thread:$0]  %s0, 256, %s18, [#allocation4], 128, 128, 8
    $region5: #{generator_forward.1} parent=1 // pred_fallthru
      _
    // Predicated region
    $region6: #{generator_forward.1} parent=1 // pred_check
      _
    $region7: #{generator_forward.1} parent=1 // pred_check_branch
      %25 = sbr.rel (0) target = $region9
    $region8: #{generator_forward.1} parent=1 // pred_region
      %s27 = ssub.s32 256, 256
      %28 = vsyncadd [#allocation6], %s27
      %s29 = sshll.u32 [#allocation5], 4
      %s30 = int_to_ptr.vmem [resolvable:$true] %s29
      %35 = dma.hbm_to_vmem [thread:$0]  %s1, 256, %s30, [#allocation6], 64, 64, 4
    $region9: #{generator_forward.1} parent=1 // pred_fallthru
      _
    // Predicated region
    $region10: #{generator_forward.1} parent=1 // pred_check
      _
    $region11: #{generator_forward.1} parent=1 // pred_check_branch
      %37 = sbr.rel (0) target = $region13
    $region12: #{generator_forward.1} parent=1 // pred_region
      _
    $region13: #{generator_forward.1} parent=1 // pred_fallthru
      _
    // Predicated region
    $region14: #{generator_forward.1} parent=1 // pred_check
      _
    $region15: #{generator_forward.1} parent=1 // pred_check_branch
      %39 = sbr.rel (0) target = $region17
    $region16: #{generator_forward.1} parent=1 // pred_region
      %s41 = ssub.s32 1024, 1024
      %42 = vsyncadd [#allocation6], %s41
      %s43 = sshll.u32 [#allocation7], 4
      %s44 = int_to_ptr.vmem [resolvable:$true] %s43
      %49 = dma.hbm_to_vmem [thread:$0]  %s3, 1024, %s44, [#allocation6], 64, 64, 4
    $region17: #{generator_forward.1} parent=1 // pred_fallthru
      _
    // Predicated region
    $region18: #{generator_forward.1} parent=1 // pred_check
      _
    $region19: #{generator_forward.1} parent=1 // pred_check_branch
      %51 = sbr.rel (0) target = $region21
    $region20: #{generator_forward.1} parent=1 // pred_region
      _
    $region21: #{generator_forward.1} parent=1 // pred_fallthru
      _
    // Predicated region
    $region22: #{generator_forward.1} parent=1 // pred_check
      _
    $region23: #{generator_forward.1} parent=1 // pred_check_branch
      %53 = sbr.rel (0) target = $region25
    $region24: #{generator_forward.1} parent=1 // pred_region
      %54 = dma.done [#allocation4], 256
    $region25: #{generator_forward.1} parent=1 // pred_fallthru
      _
    // Predicated region
    $region26: #{generator_forward.1} parent=1 // pred_check
      _
    $region27: #{generator_forward.1} parent=1 // pred_check_branch
      %56 = sbr.rel (0) target = $region29
    $region28: #{generator_forward.1} parent=1 // pred_region
      %57 = dma.done [#allocation6], 256
    $region29: #{generator_forward.1} parent=1 // pred_fallthru
      _
    // Predicated region
    $region30: #{generator_forward.1} parent=1 // pred_check
      _
    $region31: #{generator_forward.1} parent=1 // pred_check_branch
      %59 = sbr.rel (0) target = $region33
    $region32: #{generator_forward.1} parent=1 // pred_region
      %60 = dma.done [#allocation6], 1024
    $region33: #{generator_forward.1} parent=1 // pred_fallthru
      _
    %p62 = scmp.eq.s32.totalorder 0, 0
    // Predicated region
    $region34: #{generator_forward.1} parent=1 // pred_check
      %p63 = pneg %p62
    $region35: #{generator_forward.1} parent=1 // pred_check_branch
      %65 = sbr.rel (%p63) target = $region37
    $region36: #{generator_forward.1} parent=1 // pred_region
      %v66 = vld [vmem:[#allocation3] sm:$0xff]
      %v67 = vld [vmem:[#allocation3 + $0x8] sm:$0xff]
      %v68 = vpack.c.bf16 %v67, %v66
      %v69 = vld [vmem:[#allocation5] sm:$0xf]
      %v70 = vld [vmem:[#allocation5 + $0x4] sm:$0xf]
      %v71 = vld [vmem:[#allocation5 + $0x8] sm:$0xf]
      %v72 = vld [vmem:[#allocation5 + $0xc] sm:$0xf]
      %v73 = vld [vmem:[%s2] sm:$0x1]
      %v75 = vlaneseq
      %v76 = vshrl.u32 %v75, 7
      %v77 = vsub.s32 0, %v76
      %v78 = vrot.slane %v73, %v77
      %v84 = vunpack.c.l.b16 %v69
      %v85 = vunpack.c.l.b16 %v70
      %v86 = vunpack.c.l.b16 %v71
      %v87 = vunpack.c.l.b16 %v72
      %v88 = vpack.c.b16 %v85, %v84
      %v89 = vpack.c.b16 %v87, %v86
      %vm92 = vcmask 261120
      %v94 = vsel %vm92, %v68, 0
      %96 = vmatprep.subr.bf16.mxu0 0
      %97 = vmatpush1.bf16.msra.mxu0 0
      %98 = vmatprep.subr.bf16.mxu0 0
      %99 = vmatpush1.bf16.msra.mxu0 0
      %100 = vmatprep.subr.bf16.mxu0 0
      %101 = vmatpush1.bf16.msra.mxu0 0
      %102 = vmatprep.subr.bf16.mxu0 0
      %103 = vmatpush1.bf16.msra.mxu0 0
      %104 = vmatprep.subr.bf16.mxu0 0
      %105 = vmatpush1.bf16.msra.mxu0 0
      %106 = vmatprep.subr.bf16.mxu0 0
      %107 = vmatpush1.bf16.msra.mxu0 0
      %108 = vmatprep.subr.bf16.mxu0 0
      %109 = vmatpush1.bf16.msra.mxu0 %v89
      %110 = vmatprep.subr.bf16.mxu0 0
      %111 = vmatpush1.bf16.msra.mxu0 %v88
      %112 = vmatprep.subr.bf16.mxu0 0
      %113 = vmatpush2.bf16.msra.mxu0 0
      %114 = vmatprep.subr.bf16.mxu0 0
      %115 = vmatpush2.bf16.msra.mxu0 0
      %116 = vmatprep.subr.bf16.mxu0 0
      %117 = vmatpush2.bf16.msra.mxu0 0
      %118 = vmatprep.subr.bf16.mxu0 0
      %119 = vmatpush2.bf16.msra.mxu0 0
      %120 = vmatprep.subr.bf16.mxu0 0
      %121 = vmatpush2.bf16.msra.mxu0 0
      %122 = vmatprep.subr.bf16.mxu0 0
      %123 = vmatpush2.bf16.msra.mxu0 0
      %124 = vmatprep.subr.bf16.mxu0 0
      %125 = vmatpush2.bf16.msra.mxu0 0
      %126 = vmatprep.subr.bf16.mxu0 0
      %127 = vmatpush2.bf16.msra.mxu0 0
      %128 = vmatprep.mubr.bf16.mxu0 0
      %129 = vmatmul.mubr.bf16.gmra.mxu0 %v94
      %v130 = vpop.f32.mrf.mxu0
      %v131 = vadd.f32 %v78, %v130
      %v132 = vpop.f32.mrf.mxu0
      %v133 = vpop.f32.mrf.mxu0
      %v134 = vadd.f32 %v78, %v133
      %v135 = vpop.f32.mrf.mxu0
      %136 = vdwg.mxu0
      %137 = vst [vmem:[#allocation2] sm:$0xff] %v131
      %138 = vst [vmem:[#allocation2 + $0x8] sm:$0xff] %v134
    $region37: #{generator_forward.1} parent=1 // pred_fallthru
      _
    %v139 = vld [vmem:[#allocation2] sm:$0xff]
    %v140 = vld [vmem:[#allocation2 + $0x8] sm:$0xff]
    %v141 = vpack.c.bf16 %v140, %v139
    %v142 = vld [vmem:[#allocation7] sm:$0xf]
    %v143 = vld [vmem:[#allocation7 + $0x4] sm:$0xf]
    %v144 = vld [vmem:[#allocation7 + $0x8] sm:$0xf]
    %v145 = vld [vmem:[#allocation7 + $0xc] sm:$0xf]
    %v146 = vld [vmem:[#allocation7 + $0x10] sm:$0xf]
    %v147 = vld [vmem:[#allocation7 + $0x14] sm:$0xf]
    %v148 = vld [vmem:[#allocation7 + $0x18] sm:$0xf]
    %v149 = vld [vmem:[#allocation7 + $0x1c] sm:$0xf]
    %v150 = vld [vmem:[#allocation7 + $0x20] sm:$0xf]
    %v151 = vld [vmem:[#allocation7 + $0x24] sm:$0xf]
    %v152 = vld [vmem:[#allocation7 + $0x28] sm:$0xf]
    %v153 = vld [vmem:[#allocation7 + $0x2c] sm:$0xf]
    %v154 = vld [vmem:[#allocation7 + $0x30] sm:$0xf]
    %v155 = vld [vmem:[#allocation7 + $0x34] sm:$0xf]
    %v156 = vld [vmem:[#allocation7 + $0x38] sm:$0xf]
    %v157 = vld [vmem:[#allocation7 + $0x3c] sm:$0xf]
    %v158 = vld [vmem:[%s4] sm:$0x1]
    %v160 = vlaneseq
    %v161 = vshrl.u32 %v160, 7
    %v162 = vsub.s32 0, %v161
    %v163 = vrot.slane %v158, %v162
    %v181 = vunpack.c.l.b16 %v142
    %v182 = vunpack.c.l.b16 %v143
    %v183 = vunpack.c.l.b16 %v144
    %v184 = vunpack.c.l.b16 %v145
    %v185 = vunpack.c.l.b16 %v146
    %v186 = vunpack.c.l.b16 %v147
    %v187 = vunpack.c.l.b16 %v148
    %v188 = vunpack.c.l.b16 %v149
    %v189 = vunpack.c.l.b16 %v150
    %v190 = vunpack.c.l.b16 %v151
    %v191 = vunpack.c.l.b16 %v152
    %v192 = vunpack.c.l.b16 %v153
    %v193 = vunpack.c.l.b16 %v154
    %v194 = vunpack.c.l.b16 %v155
    %v195 = vunpack.c.l.b16 %v156
    %v196 = vunpack.c.l.b16 %v157
    %v197 = vpack.c.b16 %v182, %v181
    %v198 = vpack.c.b16 %v184, %v183
    %v199 = vpack.c.b16 %v186, %v185
    %v200 = vpack.c.b16 %v188, %v187
    %v201 = vpack.c.b16 %v190, %v189
    %v202 = vpack.c.b16 %v192, %v191
    %v203 = vpack.c.b16 %v194, %v193
    %v204 = vpack.c.b16 %v196, %v195
    %213 = vmatprep.subr.bf16.mxu0 0
    %214 = vmatpush1.bf16.msra.mxu0 %v204
    %215 = vmatprep.subr.bf16.mxu0 0
    %216 = vmatpush1.bf16.msra.mxu0 %v203
    %217 = vmatprep.subr.bf16.mxu0 0
    %218 = vmatpush1.bf16.msra.mxu0 %v202
    %219 = vmatprep.subr.bf16.mxu0 0
    %220 = vmatpush1.bf16.msra.mxu0 %v201
    %221 = vmatprep.subr.bf16.mxu0 0
    %222 = vmatpush1.bf16.msra.mxu0 %v200
    %223 = vmatprep.subr.bf16.mxu0 0
    %224 = vmatpush1.bf16.msra.mxu0 %v199
    %225 = vmatprep.subr.bf16.mxu0 0
    %226 = vmatpush1.bf16.msra.mxu0 %v198
    %227 = vmatprep.subr.bf16.mxu0 0
    %228 = vmatpush1.bf16.msra.mxu0 %v197
    %229 = vmatprep.subr.bf16.mxu0 0
    %230 = vmatpush2.bf16.msra.mxu0 0
    %231 = vmatprep.subr.bf16.mxu0 0
    %232 = vmatpush2.bf16.msra.mxu0 0
    %233 = vmatprep.subr.bf16.mxu0 0
    %234 = vmatpush2.bf16.msra.mxu0 0
    %235 = vmatprep.subr.bf16.mxu0 0
    %236 = vmatpush2.bf16.msra.mxu0 0
    %237 = vmatprep.subr.bf16.mxu0 0
    %238 = vmatpush2.bf16.msra.mxu0 0
    %239 = vmatprep.subr.bf16.mxu0 0
    %240 = vmatpush2.bf16.msra.mxu0 0
    %241 = vmatprep.subr.bf16.mxu0 0
    %242 = vmatpush2.bf16.msra.mxu0 0
    %243 = vmatprep.subr.bf16.mxu0 0
    %244 = vmatpush2.bf16.msra.mxu0 0
    %245 = vmatprep.mubr.bf16.mxu0 0
    %246 = vmatmul.mubr.bf16.gmra.mxu0 %v141
    %v247 = vpop.f32.mrf.mxu0
    %v248 = vadd.f32 %v163, %v247
    %v249 = vpop.f32.mrf.mxu0
    %v250 = vpop.f32.mrf.mxu0
    %v251 = vadd.f32 %v163, %v250
    %v252 = vpop.f32.mrf.mxu0
    %253 = vdwg.mxu0
    %254 = vst [vmem:[%s5] sm:$0xff] %v248
    %255 = vst [vmem:[%s5 + $0x8] sm:$0xff] %v251
    // Predicated region
    $region38: #{generator_forward.1} parent=1 // pred_check
      _
    $region39: #{generator_forward.1} parent=1 // pred_check_branch
      %257 = sbr.rel (0) target = $region41
    $region40: #{generator_forward.1} parent=1 // pred_region
      _
    $region41: #{generator_forward.1} parent=1 // pred_fallthru
      _
    // Predicated region
    $region42: #{generator_forward.1} parent=1 // pred_check
      _
    $region43: #{generator_forward.1} parent=1 // pred_check_branch
      %259 = sbr.rel (0) target = $region45
    $region44: #{generator_forward.1} parent=1 // pred_region
      _
    $region45: #{generator_forward.1} parent=1 // pred_fallthru
      _
    %260 = vsyncpa [#allocation4], 1
    %261 = vsyncpa [#allocation6], 1

</llo_original>
